<compile_context>
chip_gen: v7x
topology: tpu7x:2x2x1
jax: 0.10.0
libtpu: 0.0.40
codegen_flags: <defaults>
</compile_context>

<pallas_src>
import jax
import jax.numpy as jnp
from jax.experimental import pallas as pl
from jax.experimental.pallas import tpu as pltpu

NEURON_COUNT = 36
LANE = 128          # hidden feature dim padded to this (36 -> 128)
SUBLANE = 16        # bf16 sublane packing: batch tile is a multiple of this
MAX_TILE_B = 2048   # max batch rows per grid step
JNP_FALLBACK_B = 128  # below this, a plain fused-XLA forward is faster


def _round_up(n: int, m: int) -> int:
    return ((n + m - 1) // m) * m


def _cdiv(a: int, b: int) -> int:
    return (a + b - 1) // b


def _mlp_kernel(x_ref, w1_ref, b1_ref, w2_ref, b2_ref, w3_ref, b3_ref, o_ref):
    # One batch tile per grid step; weights/biases use a constant index_map so
    # they stay VMEM-resident across steps — only x and o stream through HBM.
    x = x_ref[...].astype(jnp.bfloat16)  # (TILE_B, 64): cast in VMEM, not in the wrapper

    # input_layer + relu (MXU in bf16, f32 accumulate; elementwise chain in f32)
    h = jnp.dot(x, w1_ref[...], preferred_element_type=jnp.float32) + b1_ref[...]
    h = jnp.maximum(h, 0.0)

    # hidden_layer + relu
    h = jnp.dot(h.astype(jnp.bfloat16), w2_ref[...],
                preferred_element_type=jnp.float32) + b2_ref[...]
    h = jnp.maximum(h, 0.0)

    # output_layer + sigmoid, stored as bf16 at native 64-lane width
    z = jnp.dot(h.astype(jnp.bfloat16), w3_ref[...],
                preferred_element_type=jnp.float32) + b3_ref[...]
    o_ref[...] = jax.nn.sigmoid(z).astype(o_ref.dtype)


def init_params(board_size: int, key):
    """PyTorch-Linear-style init (uniform +-1/sqrt(fan_in)), f32, unpadded,
    with weights stored as (in_features, out_features)."""
    input_size = board_size * board_size
    output_size = input_size
    ks = jax.random.split(key, 6)

    def linear(kw, kb, fan_in, fan_out):
        bound = 1.0 / jnp.sqrt(float(fan_in))
        w = jax.random.uniform(kw, (fan_in, fan_out), jnp.float32, -bound, bound)
        b = jax.random.uniform(kb, (1, fan_out), jnp.float32, -bound, bound)
        return w, b

    w1, b1 = linear(ks[0], ks[1], input_size, NEURON_COUNT)
    w2, b2 = linear(ks[2], ks[3], NEURON_COUNT, NEURON_COUNT)
    w3, b3 = linear(ks[4], ks[5], NEURON_COUNT, output_size)
    return {"w1": w1, "b1": b1, "w2": w2, "b2": b2, "w3": w3, "b3": b3}


def prepare_params(raw):
    """One-time layout prep: pad only the hidden dim (36 -> 128).  Input K and
    output N stay at their native 64 lanes so x and the result need no padding.
    Matmul weights in bf16 (MXU fast path), biases in f32."""
    in_size, hid = raw["w1"].shape
    out_size = raw["w3"].shape[1]
    hid_p = _round_up(hid, LANE)

    def pad2(a, rows, cols):
        return jnp.pad(a, ((0, rows - a.shape[0]), (0, cols - a.shape[1])))

    return {
        "w1": pad2(raw["w1"], in_size, hid_p).astype(jnp.bfloat16),   # (64, 128)
        "b1": pad2(raw["b1"], 1, hid_p).astype(jnp.float32),          # (1, 128)
        "w2": pad2(raw["w2"], hid_p, hid_p).astype(jnp.bfloat16),     # (128, 128)
        "b2": pad2(raw["b2"], 1, hid_p).astype(jnp.float32),          # (1, 128)
        "w3": pad2(raw["w3"], hid_p, out_size).astype(jnp.bfloat16),  # (128, 64)
        "b3": raw["b3"].astype(jnp.float32),                          # (1, 64)
        "in_size": in_size, "out_size": out_size, "hid_p": hid_p,
    }


def _choose_tiling(B: int):
    """Pick (tile_b, grid).  For multi-tile batches: even number of grid steps
    (so v7x's 2 TensorCores stay balanced) and B split evenly across them
    instead of rounding up to whole max-size tiles (minimal zero-row waste)."""
    if B <= MAX_TILE_B:
        return _round_up(max(B, SUBLANE), SUBLANE), 1
    grid = _round_up(_cdiv(B, MAX_TILE_B), 2)
    tile_b = _round_up(_cdiv(B, grid), SUBLANE)
    grid = _cdiv(B, tile_b)  # drop any step made fully empty by the rounding
    return tile_b, grid


def _jnp_forward(x, p):
    """Fused XLA path for tiny batches (pallas_call launch cost dominates)."""
    h = jnp.maximum(jnp.dot(x.astype(jnp.bfloat16), p["w1"],
                            preferred_element_type=jnp.float32) + p["b1"], 0.0)
    h = jnp.maximum(jnp.dot(h.astype(jnp.bfloat16), p["w2"],
                            preferred_element_type=jnp.float32) + p["b2"], 0.0)
    z = jnp.dot(h.astype(jnp.bfloat16), p["w3"],
                preferred_element_type=jnp.float32) + p["b3"]
    return jax.nn.sigmoid(z).astype(jnp.bfloat16)


def ai_model_forward(x, p, *, force_pallas: bool = False):
    """x: (B, board_size**2) float32.  p: output of prepare_params().
    Returns (B, board_size**2) bfloat16."""
    B, in_size = x.shape
    assert in_size == p["in_size"]
    hid_p, out_size = p["hid_p"], p["out_size"]

    if not force_pallas and B < JNP_FALLBACK_B:
        return _jnp_forward(x, p)

    tile_b, grid = _choose_tiling(B)

    flops = 2 * B * (in_size * hid_p + hid_p * hid_p + hid_p * out_size)
    bytes_accessed = (
        B * in_size * 4 + B * out_size * 2
        + sum(int(p[k].size) * p[k].dtype.itemsize
              for k in ("w1", "b1", "w2", "b2", "w3", "b3")))

    const = lambda i: (0, 0)  # weights/biases: same block every step -> VMEM-resident
    out = pl.pallas_call(
        _mlp_kernel,
        out_shape=jax.ShapeDtypeStruct((B, out_size), jnp.bfloat16),
        grid=(grid,),
        in_specs=[
            pl.BlockSpec((tile_b, in_size), lambda i: (i, 0)),  # x: streamed over batch, native width
            pl.BlockSpec((in_size, hid_p), const),              # w1
            pl.BlockSpec((1, hid_p), const),                    # b1
            pl.BlockSpec((hid_p, hid_p), const),                # w2
            pl.BlockSpec((1, hid_p), const),                    # b2
            pl.BlockSpec((hid_p, out_size), const),             # w3
            pl.BlockSpec((1, out_size), const),                 # b3
        ],
        out_specs=pl.BlockSpec((tile_b, out_size), lambda i: (i, 0)),
        compiler_params=pltpu.CompilerParams(
            dimension_semantics=("parallel",),        # batch axis shards across TCs (v7x)
            vmem_limit_bytes=32 * 1024 * 1024,        # covers 2-buf x/out tiles + f32 intermediates
        ),
        cost_estimate=pl.CostEstimate(
            flops=flops,
            transcendentals=B * out_size,             # sigmoid
            bytes_accessed=bytes_accessed,
        ),
    )(x, p["w1"], p["b1"], p["w2"], p["b2"], p["w3"], p["b3"])
    return out


def _reference_forward(x, raw):
    h = jnp.maximum(x @ raw["w1"] + raw["b1"], 0.0)
    h = jnp.maximum(h @ raw["w2"] + raw["b2"], 0.0)
    return jax.nn.sigmoid(h @ raw["w3"] + raw["b3"])


if __name__ == "__main__":
    board_size = 8            # -> input_size = output_size = 64
    batch = 2

    key = jax.random.PRNGKey(0)
    k_params, k_x, k_xbig = jax.random.split(key, 3)
    raw = init_params(board_size, k_params)
    params = prepare_params(raw)

    # Small-batch check, forced through the Pallas kernel (grid=1, ragged block).
    x = jax.random.uniform(k_x, (batch, board_size * board_size), jnp.float32)
    out = jax.block_until_ready(ai_model_forward(x, params, force_pallas=True))
    ref = _reference_forward(x, raw)
    assert out.shape == (batch, board_size * board_size)
    assert out.dtype == jnp.bfloat16
    err = float(jnp.max(jnp.abs(out.astype(jnp.float32) - ref)))
    assert jnp.allclose(out.astype(jnp.float32), ref, atol=2e-2, rtol=0.0), err

    # Large batch: multi-step grid (even #steps, balanced tiles), ragged last block.
    xb = jax.random.uniform(k_xbig, (2500, board_size * board_size), jnp.float32)
    outb = jax.block_until_ready(ai_model_forward(xb, params))
    refb = _reference_forward(xb, raw)
    assert outb.shape == xb.shape
    errb = float(jnp.max(jnp.abs(outb.astype(jnp.float32) - refb)))
    assert jnp.allclose(outb.astype(jnp.float32), refb, atol=2e-2, rtol=0.0), errb

    print("KERNEL_OK")
</pallas_src>

<mosaic_0001>
module attributes {stable_mosaic.version = 11 : i64} {
  func.func @_mlp_kernel(%arg0: i32, %arg1: memref<16x64xf32, #tpu.memory_space<vmem>>, %arg2: memref<64x128xbf16, #tpu.memory_space<vmem>>, %arg3: memref<1x128xf32, #tpu.memory_space<vmem>>, %arg4: memref<128x128xbf16, #tpu.memory_space<vmem>>, %arg5: memref<1x128xf32, #tpu.memory_space<vmem>>, %arg6: memref<128x64xbf16, #tpu.memory_space<vmem>>, %arg7: memref<1x64xf32, #tpu.memory_space<vmem>>, %arg8: memref<16x64xbf16, #tpu.memory_space<vmem>>) attributes {dimension_semantics = [#tpu.dimension_semantics<parallel>], iteration_bounds = array<i64: 1>, scalar_prefetch = 0 : i64, scratch_operands = 0 : i64, tpu.core_type = #tpu.core_type<tc>, window_params = [{transform_indices = @transform_0, window_bounds = array<i64: 16, 64>}, {pipeline_mode = #tpu.pipeline_mode<synchronous>, transform_indices = @transform_1, window_bounds = array<i64: 64, 128>}, {pipeline_mode = #tpu.pipeline_mode<synchronous>, transform_indices = @transform_2, window_bounds = array<i64: 1, 128>}, {pipeline_mode = #tpu.pipeline_mode<synchronous>, transform_indices = @transform_3, window_bounds = array<i64: 128, 128>}, {pipeline_mode = #tpu.pipeline_mode<synchronous>, transform_indices = @transform_4, window_bounds = array<i64: 1, 128>}, {pipeline_mode = #tpu.pipeline_mode<synchronous>, transform_indices = @transform_5, window_bounds = array<i64: 128, 64>}, {pipeline_mode = #tpu.pipeline_mode<synchronous>, transform_indices = @transform_6, window_bounds = array<i64: 1, 64>}, {transform_indices = @transform_7, window_bounds = array<i64: 16, 64>}]} {
    %c0 = arith.constant 0 : index
    %c0_0 = arith.constant 0 : index
    %0 = vector.load %arg1[%c0, %c0_0] : memref<16x64xf32, #tpu.memory_space<vmem>>, vector<16x64xf32>
    %1 = arith.truncf %0 : vector<16x64xf32> to vector<16x64xbf16>
    %c0_1 = arith.constant 0 : index
    %c0_2 = arith.constant 0 : index
    %2 = vector.load %arg2[%c0_1, %c0_2] : memref<64x128xbf16, #tpu.memory_space<vmem>>, vector<64x128xbf16>
    %cst = arith.constant dense<0.000000e+00> : vector<16x128xf32>
    %3 = tpu.matmul %1, %2, %cst {dimension_numbers = #tpu.dot_dimension_numbers<[1], [0], [0], [1], [0, 0, 1, 1], [], []>} : vector<16x64xbf16>, vector<64x128xbf16>, vector<16x128xf32> -> vector<16x128xf32>
    %c0_3 = arith.constant 0 : index
    %c0_4 = arith.constant 0 : index
    %4 = vector.load %arg3[%c0_3, %c0_4] : memref<1x128xf32, #tpu.memory_space<vmem>>, vector<1x128xf32>
    %5 = vector.broadcast %4 : vector<1x128xf32> to vector<16x128xf32>
    %6 = arith.addf %3, %5 : vector<16x128xf32>
    %cst_5 = arith.constant 0.000000e+00 : f32
    %7 = vector.broadcast %cst_5 : f32 to vector<16x128xf32>
    %8 = arith.maximumf %6, %7 : vector<16x128xf32>
    %9 = arith.truncf %8 : vector<16x128xf32> to vector<16x128xbf16>
    %c0_6 = arith.constant 0 : index
    %c0_7 = arith.constant 0 : index
    %10 = vector.load %arg4[%c0_6, %c0_7] : memref<128x128xbf16, #tpu.memory_space<vmem>>, vector<128x128xbf16>
    %cst_8 = arith.constant dense<0.000000e+00> : vector<16x128xf32>
    %11 = tpu.matmul %9, %10, %cst_8 {dimension_numbers = #tpu.dot_dimension_numbers<[1], [0], [0], [1], [0, 0, 1, 1], [], []>} : vector<16x128xbf16>, vector<128x128xbf16>, vector<16x128xf32> -> vector<16x128xf32>
    %c0_9 = arith.constant 0 : index
    %c0_10 = arith.constant 0 : index
    %12 = vector.load %arg5[%c0_9, %c0_10] : memref<1x128xf32, #tpu.memory_space<vmem>>, vector<1x128xf32>
    %13 = vector.broadcast %12 : vector<1x128xf32> to vector<16x128xf32>
    %14 = arith.addf %11, %13 : vector<16x128xf32>
    %cst_11 = arith.constant 0.000000e+00 : f32
    %15 = vector.broadcast %cst_11 : f32 to vector<16x128xf32>
    %16 = arith.maximumf %14, %15 : vector<16x128xf32>
    %17 = arith.truncf %16 : vector<16x128xf32> to vector<16x128xbf16>
    %c0_12 = arith.constant 0 : index
    %c0_13 = arith.constant 0 : index
    %18 = vector.load %arg6[%c0_12, %c0_13] : memref<128x64xbf16, #tpu.memory_space<vmem>>, vector<128x64xbf16>
    %cst_14 = arith.constant dense<0.000000e+00> : vector<16x64xf32>
    %19 = tpu.matmul %17, %18, %cst_14 {dimension_numbers = #tpu.dot_dimension_numbers<[1], [0], [0], [1], [0, 0, 1, 1], [], []>} : vector<16x128xbf16>, vector<128x64xbf16>, vector<16x64xf32> -> vector<16x64xf32>
    %c0_15 = arith.constant 0 : index
    %c0_16 = arith.constant 0 : index
    %20 = vector.load %arg7[%c0_15, %c0_16] : memref<1x64xf32, #tpu.memory_space<vmem>>, vector<1x64xf32>
    %21 = vector.broadcast %20 : vector<1x64xf32> to vector<16x64xf32>
    %22 = arith.addf %19, %21 : vector<16x64xf32>
    %23 = arith.negf %22 : vector<16x64xf32>
    %24 = math.exp %23 : vector<16x64xf32>
    %cst_17 = arith.constant 1.000000e+00 : f32
    %25 = vector.broadcast %cst_17 : f32 to vector<16x64xf32>
    %26 = arith.addf %25, %24 : vector<16x64xf32>
    %27 = arith.divf %25, %26 : vector<16x64xf32>
    %28 = arith.truncf %27 : vector<16x64xf32> to vector<16x64xbf16>
    %c0_18 = arith.constant 0 : index
    %c0_19 = arith.constant 0 : index
    %29 = vector.load %arg8[%c0_18, %c0_19] : memref<16x64xbf16, #tpu.memory_space<vmem>>, vector<16x64xbf16>
    tpu.vector_store %arg8[%c0_18, %c0_19], %28 {strides = array<i32>} : memref<16x64xbf16, #tpu.memory_space<vmem>>, vector<16x64xbf16>,
    return
  }
  func.func @transform_0(%arg0: i32) -> (i32, i32) {
    %c0_i32 = arith.constant 0 : i32
    %c0_i32_0 = arith.constant 0 : i32
    return %arg0, %c0_i32 : i32, i32
  }
  func.func @transform_1(%arg0: i32) -> (i32, i32) {
    %c0_i32 = arith.constant 0 : i32
    %c0_i32_0 = arith.constant 0 : i32
    %c0_i32_1 = arith.constant 0 : i32
    return %c0_i32, %c0_i32_0 : i32, i32
  }
  func.func @transform_2(%arg0: i32) -> (i32, i32) {
    %c0_i32 = arith.constant 0 : i32
    %c0_i32_0 = arith.constant 0 : i32
    %c0_i32_1 = arith.constant 0 : i32
    return %c0_i32, %c0_i32_0 : i32, i32
  }
  func.func @transform_3(%arg0: i32) -> (i32, i32) {
    %c0_i32 = arith.constant 0 : i32
    %c0_i32_0 = arith.constant 0 : i32
    %c0_i32_1 = arith.constant 0 : i32
    return %c0_i32, %c0_i32_0 : i32, i32
  }
  func.func @transform_4(%arg0: i32) -> (i32, i32) {
    %c0_i32 = arith.constant 0 : i32
    %c0_i32_0 = arith.constant 0 : i32
    %c0_i32_1 = arith.constant 0 : i32
    return %c0_i32, %c0_i32_0 : i32, i32
  }
  func.func @transform_5(%arg0: i32) -> (i32, i32) {
    %c0_i32 = arith.constant 0 : i32
    %c0_i32_0 = arith.constant 0 : i32
    %c0_i32_1 = arith.constant 0 : i32
    return %c0_i32, %c0_i32_0 : i32, i32
  }
  func.func @transform_6(%arg0: i32) -> (i32, i32) {
    %c0_i32 = arith.constant 0 : i32
    %c0_i32_0 = arith.constant 0 : i32
    %c0_i32_1 = arith.constant 0 : i32
    return %c0_i32, %c0_i32_0 : i32, i32
  }
  func.func @transform_7(%arg0: i32) -> (i32, i32) {
    %c0_i32 = arith.constant 0 : i32
    %c0_i32_0 = arith.constant 0 : i32
    return %arg0, %c0_i32 : i32, i32
  }
}

</mosaic_0001>

<llo_original>
// kernel: tpu_custom_call.1
$region0: #{tpu_custom_call.1}
  #allocation0 [shape = 'u32[]', space=smem, size = 0x4, offset = 0x4, fixed_abs, tag = 'smem constant byte address 0x4 - core index']
  #allocation1 [shape = 'u32[144,128]{1,0:T(1,128)}', space=vmem, size = 0x12000, scoped, tag = 'internal scratch']
  %s0 = inlined_call_operand.vmem [shape: f32[2,64], index: 0, kind: input, shape index: {}]
  %s1 = inlined_call_operand.vmem [shape: bf16[64,128], index: 1, kind: input, shape index: {}]
  %s2 = inlined_call_operand.vmem [shape: f32[1,128], index: 2, kind: input, shape index: {}]
  %s3 = inlined_call_operand.vmem [shape: bf16[128,128], index: 3, kind: input, shape index: {}]
  %s4 = inlined_call_operand.vmem [shape: f32[1,128], index: 4, kind: input, shape index: {}]
  %s5 = inlined_call_operand.vmem [shape: bf16[128,64], index: 5, kind: input, shape index: {}]
  %s6 = inlined_call_operand.vmem [shape: f32[1,64], index: 6, kind: input, shape index: {}]
  %s7 = inlined_call_operand.hbm [shape: bf16[2,64], index: 7, kind: output, shape index: {}]
  %s8 = sld [smem:[#allocation0]]
  $region38: #{tpu_custom_call.1} parent=0
    _
  %s10 = ssub.s32 1, %s8
  %s11 = scalar_select 0, %s10, %s8
  $region1: #{tpu_custom_call.1} parent=0
    #allocation2 [shape = 'u8[4096]{0}', space=vmem, size = 0x1000, scoped, tag = 'output window, operand 0, single buffered']
    #allocation3 [shape = 's32[1]{0}', space=sflag, size = 0x4, scoped, tag = 'scoped memory for tpu_custom_call.1']
    %12 = vsyncpa [#allocation3], 0
    // Predicated region
    $region2: #{tpu_custom_call.1} parent=1 // pred_check
      _
    $region3: #{tpu_custom_call.1} parent=1 // pred_check_branch
      %14 = sbr.rel (0) target = $region5
    $region4: #{tpu_custom_call.1} parent=1 // pred_region
      _
    $region5: #{tpu_custom_call.1} parent=1 // pred_fallthru
      _
    // Predicated region
    $region6: #{tpu_custom_call.1} parent=1 // pred_check
      _
    $region7: #{tpu_custom_call.1} parent=1 // pred_check_branch
      %16 = sbr.rel (0) target = $region9
    $region8: #{tpu_custom_call.1} parent=1 // pred_region
      _
    $region9: #{tpu_custom_call.1} parent=1 // pred_fallthru
      _
    // Predicated region
    $region10: #{tpu_custom_call.1} parent=1 // pred_check
      _
    $region11: #{tpu_custom_call.1} parent=1 // pred_check_branch
      %18 = sbr.rel (0) target = $region13
    $region12: #{tpu_custom_call.1} parent=1 // pred_region
      _
    $region13: #{tpu_custom_call.1} parent=1 // pred_fallthru
      _
    // Predicated region
    $region14: #{tpu_custom_call.1} parent=1 // pred_check
      _
    $region15: #{tpu_custom_call.1} parent=1 // pred_check_branch
      %20 = sbr.rel (0) target = $region17
    $region16: #{tpu_custom_call.1} parent=1 // pred_region
      _
    $region17: #{tpu_custom_call.1} parent=1 // pred_fallthru
      _
    // Predicated region
    $region18: #{tpu_custom_call.1} parent=1 // pred_check
      _
    $region19: #{tpu_custom_call.1} parent=1 // pred_check_branch
      %22 = sbr.rel (0) target = $region21
    $region20: #{tpu_custom_call.1} parent=1 // pred_region
      _
    $region21: #{tpu_custom_call.1} parent=1 // pred_fallthru
      _
    // Predicated region
    $region22: #{tpu_custom_call.1} parent=1 // pred_check
      _
    $region23: #{tpu_custom_call.1} parent=1 // pred_check_branch
      %24 = sbr.rel (0) target = $region25
    $region24: #{tpu_custom_call.1} parent=1 // pred_region
      _
    $region25: #{tpu_custom_call.1} parent=1 // pred_fallthru
      _
    // Predicated region
    $region26: #{tpu_custom_call.1} parent=1 // pred_check
      _
    $region27: #{tpu_custom_call.1} parent=1 // pred_check_branch
      %26 = sbr.rel (0) target = $region29
    $region28: #{tpu_custom_call.1} parent=1 // pred_region
      _
    $region29: #{tpu_custom_call.1} parent=1 // pred_fallthru
      _
    %v28 = vld [vmem:[%s0] sm:$0xff]
    %v29 = vld [vmem:[%s0 + $0x8] sm:$0xff]
    %v30 = vpack.c.bf16 %v29, %v28
    %v31 = vld [vmem:[%s1] sm:$0xf]
    %v32 = vld [vmem:[%s1 + $0x4] sm:$0xf]
    %v33 = vld [vmem:[%s1 + $0x8] sm:$0xf]
    %v34 = vld [vmem:[%s1 + $0xc] sm:$0xf]
    %v35 = vld [vmem:[%s1 + $0x10] sm:$0xf]
    %v36 = vld [vmem:[%s1 + $0x14] sm:$0xf]
    %v37 = vld [vmem:[%s1 + $0x18] sm:$0xf]
    %v38 = vld [vmem:[%s1 + $0x1c] sm:$0xf]
    %v39 = vld [vmem:[%s2] sm:$0x1]
    %v41 = vlaneseq
    %v42 = vshrl.u32 %v41, 7
    %v43 = vsub.s32 0, %v42
    %v44 = vrot.slane %v39, %v43
    %v54 = vunpack.c.l.b16 %v31
    %v55 = vunpack.c.l.b16 %v32
    %v56 = vunpack.c.l.b16 %v33
    %v57 = vunpack.c.l.b16 %v34
    %v58 = vunpack.c.l.b16 %v35
    %v59 = vunpack.c.l.b16 %v36
    %v60 = vunpack.c.l.b16 %v37
    %v61 = vunpack.c.l.b16 %v38
    %v62 = vpack.c.b16 %v55, %v54
    %v63 = vpack.c.b16 %v57, %v56
    %v64 = vpack.c.b16 %v59, %v58
    %v65 = vpack.c.b16 %v61, %v60
    %vm70 = vcmask 523264
    %v72 = vsel %vm70, %v30, 0
    %74 = vmatprep.subr.bf16.mxu0 0
    %75 = vmatpush1.bf16.msra.mxu0 %v62
    %76 = vmatprep.subr.bf16.mxu0 0
    %77 = vmatpush1.bf16.msra.mxu0 %v63
    %78 = vmatprep.subr.bf16.mxu0 0
    %79 = vmatpush1.bf16.msra.mxu0 %v64
    %80 = vmatprep.subr.bf16.mxu0 0
    %81 = vmatpush1.bf16.msra.mxu0 %v65
    %82 = vmatprep.subr.bf16.mxu0 0
    %83 = vmatpush1.bf16.msra.mxu0 0
    %84 = vmatprep.subr.bf16.mxu0 0
    %85 = vmatpush1.bf16.msra.mxu0 0
    %86 = vmatprep.subr.bf16.mxu0 0
    %87 = vmatpush1.bf16.msra.mxu0 0
    %88 = vmatprep.subr.bf16.mxu0 0
    %89 = vmatpush1.bf16.msra.mxu0 0
    %90 = vmatprep.subr.bf16.mxu0 0
    %91 = vmatpush1.bf16.msra.mxu0 0
    %92 = vmatprep.subr.bf16.mxu0 0
    %93 = vmatpush1.bf16.msra.mxu0 0
    %94 = vmatprep.subr.bf16.mxu0 0
    %95 = vmatpush1.bf16.msra.mxu0 0
    %96 = vmatprep.subr.bf16.mxu0 0
    %97 = vmatpush1.bf16.msra.mxu0 0
    %98 = vmatprep.subr.bf16.mxu0 0
    %99 = vmatpush1.bf16.msra.mxu0 0
    %100 = vmatprep.subr.bf16.mxu0 0
    %101 = vmatpush1.bf16.msra.mxu0 0
    %102 = vmatprep.subr.bf16.mxu0 0
    %103 = vmatpush1.bf16.msra.mxu0 0
    %104 = vmatprep.subr.bf16.mxu0 0
    %105 = vmatpush1.bf16.msra.mxu0 0
    %106 = vmatprep.mubr.bf16.mxu0 0
    %107 = vmatmul.mubr.bf16.gmra.mrb[0].mxu0 %v72
    %v108 = vpop.f32.mrb[0].mxu0
    %v109 = vadd.f32 %v44, %v108
    %v110 = vpop.f32.mrb[0].mxu0
    %v111 = vpop.f32.mrb[0].mxu0
    %v112 = vadd.f32 %v44, %v111
    %v113 = vpop.f32.mrb[0].mxu0
    %114 = vdwg.mxu0
    %v115 = vmax.f32 %v109, 0.0
    %v116 = vmax.f32 %v112, 0.0
    %v117 = vpack.c.bf16 %v116, %v115
    %v118 = vld [vmem:[%s3] sm:$0xf]
    %v119 = vld [vmem:[%s3 + $0x4] sm:$0xf]
    %v120 = vld [vmem:[%s3 + $0x8] sm:$0xf]
    %v121 = vld [vmem:[%s3 + $0xc] sm:$0xf]
    %v122 = vld [vmem:[%s3 + $0x10] sm:$0xf]
    %v123 = vld [vmem:[%s3 + $0x14] sm:$0xf]
    %v124 = vld [vmem:[%s3 + $0x18] sm:$0xf]
    %v125 = vld [vmem:[%s3 + $0x1c] sm:$0xf]
    %v126 = vld [vmem:[%s3 + $0x20] sm:$0xf]
    %v127 = vld [vmem:[%s3 + $0x24] sm:$0xf]
    %v128 = vld [vmem:[%s3 + $0x28] sm:$0xf]
    %v129 = vld [vmem:[%s3 + $0x2c] sm:$0xf]
    %v130 = vld [vmem:[%s3 + $0x30] sm:$0xf]
    %v131 = vld [vmem:[%s3 + $0x34] sm:$0xf]
    %v132 = vld [vmem:[%s3 + $0x38] sm:$0xf]
    %v133 = vld [vmem:[%s3 + $0x3c] sm:$0xf]
    %v134 = vld [vmem:[%s4] sm:$0x1]
    %v136 = vlaneseq
    %v137 = vshrl.u32 %v136, 7
    %v138 = vsub.s32 0, %v137
    %v139 = vrot.slane %v134, %v138
    %v157 = vunpack.c.l.b16 %v118
    %v158 = vunpack.c.l.b16 %v119
    %v159 = vunpack.c.l.b16 %v120
    %v160 = vunpack.c.l.b16 %v121
    %v161 = vunpack.c.l.b16 %v122
    %v162 = vunpack.c.l.b16 %v123
    %v163 = vunpack.c.l.b16 %v124
    %v164 = vunpack.c.l.b16 %v125
    %v165 = vunpack.c.l.b16 %v126
    %v166 = vunpack.c.l.b16 %v127
    %v167 = vunpack.c.l.b16 %v128
    %v168 = vunpack.c.l.b16 %v129
    %v169 = vunpack.c.l.b16 %v130
    %v170 = vunpack.c.l.b16 %v131
    %v171 = vunpack.c.l.b16 %v132
    %v172 = vunpack.c.l.b16 %v133
    %v173 = vpack.c.b16 %v158, %v157
    %v174 = vpack.c.b16 %v160, %v159
    %v175 = vpack.c.b16 %v162, %v161
    %v176 = vpack.c.b16 %v164, %v163
    %v177 = vpack.c.b16 %v166, %v165
    %v178 = vpack.c.b16 %v168, %v167
    %v179 = vpack.c.b16 %v170, %v169
    %v180 = vpack.c.b16 %v172, %v171
    %189 = vmatprep.subr.bf16.mxu0 0
    %190 = vmatpush1.bf16.msra.mxu0 %v173
    %191 = vmatprep.subr.bf16.mxu0 0
    %192 = vmatpush1.bf16.msra.mxu0 %v174
    %193 = vmatprep.subr.bf16.mxu0 0
    %194 = vmatpush1.bf16.msra.mxu0 %v175
    %195 = vmatprep.subr.bf16.mxu0 0
    %196 = vmatpush1.bf16.msra.mxu0 %v176
    %197 = vmatprep.subr.bf16.mxu0 0
    %198 = vmatpush1.bf16.msra.mxu0 %v177
    %199 = vmatprep.subr.bf16.mxu0 0
    %200 = vmatpush1.bf16.msra.mxu0 %v178
    %201 = vmatprep.subr.bf16.mxu0 0
    %202 = vmatpush1.bf16.msra.mxu0 %v179
    %203 = vmatprep.subr.bf16.mxu0 0
    %204 = vmatpush1.bf16.msra.mxu0 %v180
    %205 = vmatprep.subr.bf16.mxu0 0
    %206 = vmatpush1.bf16.msra.mxu0 0
    %207 = vmatprep.subr.bf16.mxu0 0
    %208 = vmatpush1.bf16.msra.mxu0 0
    %209 = vmatprep.subr.bf16.mxu0 0
    %210 = vmatpush1.bf16.msra.mxu0 0
    %211 = vmatprep.subr.bf16.mxu0 0
    %212 = vmatpush1.bf16.msra.mxu0 0
    %213 = vmatprep.subr.bf16.mxu0 0
    %214 = vmatpush1.bf16.msra.mxu0 0
    %215 = vmatprep.subr.bf16.mxu0 0
    %216 = vmatpush1.bf16.msra.mxu0 0
    %217 = vmatprep.subr.bf16.mxu0 0
    %218 = vmatpush1.bf16.msra.mxu0 0
    %219 = vmatprep.subr.bf16.mxu0 0
    %220 = vmatpush1.bf16.msra.mxu0 0
    %221 = vmatprep.mubr.bf16.mxu0 0
    %222 = vmatmul.mubr.bf16.gmra.mrb[0].mxu0 %v117
    %v223 = vpop.f32.mrb[0].mxu0
    %v224 = vadd.f32 %v139, %v223
    %v225 = vpop.f32.mrb[0].mxu0
    %v226 = vpop.f32.mrb[0].mxu0
    %v227 = vadd.f32 %v139, %v226
    %v228 = vpop.f32.mrb[0].mxu0
    %229 = vdwg.mxu0
    %v230 = vmax.f32 %v224, 0.0
    %v231 = vmax.f32 %v227, 0.0
    %v232 = vpack.c.bf16 %v231, %v230
    %v233 = vld [vmem:[%s5] sm:$0xf]
    %v234 = vld [vmem:[%s5 + $0x4] sm:$0xf]
    %v235 = vld [vmem:[%s5 + $0x8] sm:$0xf]
    %v236 = vld [vmem:[%s5 + $0xc] sm:$0xf]
    %v237 = vld [vmem:[%s5 + $0x10] sm:$0xf]
    %v238 = vld [vmem:[%s5 + $0x14] sm:$0xf]
    %v239 = vld [vmem:[%s5 + $0x18] sm:$0xf]
    %v240 = vld [vmem:[%s5 + $0x1c] sm:$0xf]
    %v241 = vld [vmem:[%s5 + $0x20] sm:$0xf]
    %v242 = vld [vmem:[%s5 + $0x24] sm:$0xf]
    %v243 = vld [vmem:[%s5 + $0x28] sm:$0xf]
    %v244 = vld [vmem:[%s5 + $0x2c] sm:$0xf]
    %v245 = vld [vmem:[%s5 + $0x30] sm:$0xf]
    %v246 = vld [vmem:[%s5 + $0x34] sm:$0xf]
    %v247 = vld [vmem:[%s5 + $0x38] sm:$0xf]
    %v248 = vld [vmem:[%s5 + $0x3c] sm:$0xf]
    %v249 = vld [vmem:[%s6] sm:$0x1]
    %v251 = vlaneseq
    %v252 = vshrl.u32 %v251, 7
    %v253 = vsub.s32 0, %v252
    %v254 = vrot.slane %v249, %v253
    %v272 = vunpack.c.l.b16 %v233
    %v273 = vunpack.c.l.b16 %v234
    %v274 = vunpack.c.l.b16 %v235
    %v275 = vunpack.c.l.b16 %v236
    %v276 = vunpack.c.l.b16 %v237
    %v277 = vunpack.c.l.b16 %v238
    %v278 = vunpack.c.l.b16 %v239
    %v279 = vunpack.c.l.b16 %v240
    %v280 = vunpack.c.l.b16 %v241
    %v281 = vunpack.c.l.b16 %v242
    %v282 = vunpack.c.l.b16 %v243
    %v283 = vunpack.c.l.b16 %v244
    %v284 = vunpack.c.l.b16 %v245
    %v285 = vunpack.c.l.b16 %v246
    %v286 = vunpack.c.l.b16 %v247
    %v287 = vunpack.c.l.b16 %v248
    %v288 = vpack.c.b16 %v273, %v272
    %v289 = vpack.c.b16 %v275, %v274
    %v290 = vpack.c.b16 %v277, %v276
    %v291 = vpack.c.b16 %v279, %v278
    %v292 = vpack.c.b16 %v281, %v280
    %v293 = vpack.c.b16 %v283, %v282
    %v294 = vpack.c.b16 %v285, %v284
    %v295 = vpack.c.b16 %v287, %v286
    %304 = vmatprep.subr.bf16.mxu0 0
    %305 = vmatpush1.bf16.msra.mxu0 %v288
    %306 = vmatprep.subr.bf16.mxu0 0
    %307 = vmatpush1.bf16.msra.mxu0 %v289
    %308 = vmatprep.subr.bf16.mxu0 0
    %309 = vmatpush1.bf16.msra.mxu0 %v290
    %310 = vmatprep.subr.bf16.mxu0 0
    %311 = vmatpush1.bf16.msra.mxu0 %v291
    %312 = vmatprep.subr.bf16.mxu0 0
    %313 = vmatpush1.bf16.msra.mxu0 %v292
    %314 = vmatprep.subr.bf16.mxu0 0
    %315 = vmatpush1.bf16.msra.mxu0 %v293
    %316 = vmatprep.subr.bf16.mxu0 0
    %317 = vmatpush1.bf16.msra.mxu0 %v294
    %318 = vmatprep.subr.bf16.mxu0 0
    %319 = vmatpush1.bf16.msra.mxu0 %v295
    %320 = vmatprep.subr.bf16.mxu0 0
    %321 = vmatpush1.bf16.msra.mxu0 0
    %322 = vmatprep.subr.bf16.mxu0 0
    %323 = vmatpush1.bf16.msra.mxu0 0
    %324 = vmatprep.subr.bf16.mxu0 0
    %325 = vmatpush1.bf16.msra.mxu0 0
    %326 = vmatprep.subr.bf16.mxu0 0
    %327 = vmatpush1.bf16.msra.mxu0 0
    %328 = vmatprep.subr.bf16.mxu0 0
    %329 = vmatpush1.bf16.msra.mxu0 0
    %330 = vmatprep.subr.bf16.mxu0 0
    %331 = vmatpush1.bf16.msra.mxu0 0
    %332 = vmatprep.subr.bf16.mxu0 0
    %333 = vmatpush1.bf16.msra.mxu0 0
    %334 = vmatprep.subr.bf16.mxu0 0
    %335 = vmatpush1.bf16.msra.mxu0 0
    %336 = vmatprep.mubr.bf16.mxu0 0
    %337 = vmatmul.mubr.bf16.gmra.mrb[0].mxu0 %v232
    %v338 = vpop.f32.mrb[0].mxu0
    %v339 = vadd.f32 %v254, %v338
    %v340 = vpop.f32.mrb[0].mxu0
    %v341 = vpop.f32.mrb[0].mxu0
    %v342 = vadd.f32 %v254, %v341
    %v343 = vpop.f32.mrb[0].mxu0
    %344 = vdwg.mxu0
    %v345 = vxor.u32 %v339, 2147483648
    %v346 = vxor.u32 %v342, 2147483648
    %v347 = vmul.f32 %v345, 1.442695
    %v348 = vpow.pop %v347
    %v349 = vmul.f32 %v346, 1.442695
    %v350 = vpow.pop %v349
    %v351 = vadd.f32 %v348, 1.0
    %v352 = vadd.f32 %v350, 1.0
    %v353 = vrcp.pop %v351
    %v354 = vmul.f32 1.0, %v353
    %v355 = vrcp.pop %v352
    %v356 = vmul.f32 1.0, %v355
    %v357 = vpack.c.bf16 %v356, %v354
    %v359 = vcombine.high %v357, %v357
    %v361 = vunpack.c.l.s4 1966171168
    %v362 = vunpack.c.0.s8 %v361
    %v363 = vlaneseq
    %v364 = vshrl.u32 %v363, 7
    %v365 = vsub.s32 %v362, %v364
    %v366 = vrot.slane %v357, %v365
    %v368 = vunpack.c.l.s4 1966171168
    %v369 = vunpack.c.0.s8 %v368
    %v370 = vlaneseq
    %v371 = vshrl.u32 %v370, 7
    %v372 = vsub.s32 %v369, %v371
    %v373 = vrot.slane %v359, %v372
    %v374 = vcombine.high %v366, %v366
    %v375 = vcombine.high %v373, %v373
    %v377 = vunpack.c.l.s4 1966171168
    %v378 = vunpack.c.0.s8 %v377
    %v379 = vlaneseq
    %v380 = vshrl.u32 %v379, 7
    %v381 = vsub.s32 %v378, %v380
    %v382 = vrot.slane %v366, %v381
    %v384 = vunpack.c.l.s4 1966171168
    %v385 = vunpack.c.0.s8 %v384
    %v386 = vlaneseq
    %v387 = vshrl.u32 %v386, 7
    %v388 = vsub.s32 %v385, %v387
    %v389 = vrot.slane %v373, %v388
    %v391 = vunpack.c.l.s4 1966171168
    %v392 = vunpack.c.0.s8 %v391
    %v393 = vlaneseq
    %v394 = vshrl.u32 %v393, 7
    %v395 = vsub.s32 %v392, %v394
    %v396 = vrot.slane %v374, %v395
    %v398 = vunpack.c.l.s4 1966171168
    %v399 = vunpack.c.0.s8 %v398
    %v400 = vlaneseq
    %v401 = vshrl.u32 %v400, 7
    %v402 = vsub.s32 %v399, %v401
    %v403 = vrot.slane %v375, %v402
    %v404 = vcombine.high %v382, %v382
    %v405 = vcombine.high %v389, %v389
    %v406 = vcombine.high %v396, %v396
    %v407 = vcombine.high %v403, %v403
    %vm416 = vcmask 516096
    %417 = vst.msk [vmem:[#allocation2] sm:$0x1] %vm416, %v382
    %418 = vst.msk [vmem:[#allocation2 + $0x1] sm:$0x1] %vm416, %v396
    %419 = vst.msk [vmem:[#allocation2 + $0x2] sm:$0x1] %vm416, %v404
    %420 = vst.msk [vmem:[#allocation2 + $0x3] sm:$0x1] %vm416, %v406
    %421 = vst.msk [vmem:[#allocation2 + $0x4] sm:$0x1] %vm416, %v389
    %422 = vst.msk [vmem:[#allocation2 + $0x5] sm:$0x1] %vm416, %v403
    %423 = vst.msk [vmem:[#allocation2 + $0x6] sm:$0x1] %vm416, %v405
    %424 = vst.msk [vmem:[#allocation2 + $0x7] sm:$0x1] %vm416, %v407
    // Predicated region
    $region30: #{tpu_custom_call.1} parent=1 // pred_check
      _
    $region31: #{tpu_custom_call.1} parent=1 // pred_check_branch
      %426 = sbr.rel (0) target = $region33
    $region32: #{tpu_custom_call.1} parent=1 // pred_region
      %s428 = ssub.s32 128, 16
      %429 = vsyncadd [#allocation3], %s428
      %s430 = sshll.u32 [#allocation2], 4
      %s431 = int_to_ptr.vmem [resolvable:$true] %s430
      %436 = dma.vmem_to_hbm [thread:$0]  %s431, 16, %s7, [#allocation3], 16, 16, 1
    $region33: #{tpu_custom_call.1} parent=1 // pred_fallthru
      _
    // Predicated region
    $region34: #{tpu_custom_call.1} parent=1 // pred_check
      _
    $region35: #{tpu_custom_call.1} parent=1 // pred_check_branch
      %438 = sbr.rel (0) target = $region37
    $region36: #{tpu_custom_call.1} parent=1 // pred_region
      %439 = dma.done [#allocation3], 128
    $region37: #{tpu_custom_call.1} parent=1 // pred_fallthru
      _
    %440 = vsyncpa [#allocation3], 1

</llo_original>
